<compile_context>
chip_gen: v5e
topology: v5e:2x2
jax: 0.10.0
libtpu: 0.0.40
codegen_flags: <defaults>
</compile_context>

<pallas_src>
import functools
import math

import jax
import jax.numpy as jnp
import numpy as np
from jax import lax
from jax.experimental import pallas as pl
from jax.experimental.pallas import tpu as pltpu

NEG_INF = -0.7 * float(np.finfo(np.float32).max)  # finite "-inf" (avoids NaN paths)


def _round_up(x, m):
    return (x + m - 1) // m * m


def _pick_tile(full, target, align):
    """Return (tile, padded_full). Prefers a tile that divides `full` (no pad)."""
    if full <= target:
        return full, full                      # block spans the whole dim (legal)
    if full % target == 0:
        return target, full
    t = (target // align) * align
    while t >= align:
        if full % t == 0:
            return t, full
        t -= align
    return target, _round_up(full, target)     # fall back to zero-padding


def _choose_block(full, target, align):
    if full <= target:
        return full
    t = (target // align) * align
    while t > align and full % t:
        t -= align
    return t if full % t == 0 else full


# ----------------------------------------------------------------------------
# Tiled matmul:  y = x @ w   (or x @ w.T with transpose_rhs, no weight copy)
# f32 accumulation in VMEM scratch; K axis innermost / "arbitrary".
# ----------------------------------------------------------------------------
def _matmul_kernel(x_ref, w_ref, o_ref, acc_ref, *, transpose_rhs):
    @pl.when(pl.program_id(2) == 0)
    def _init():
        acc_ref[...] = jnp.zeros_like(acc_ref)

    if transpose_rhs:
        # contract x dim 1 with w dim 1: MXU consumes the transposed orientation
        acc_ref[...] += lax.dot_general(
            x_ref[...], w_ref[...], (((1,), (1,)), ((), ())),
            preferred_element_type=jnp.float32)
    else:
        acc_ref[...] += jnp.dot(x_ref[...], w_ref[...],
                                preferred_element_type=jnp.float32)

    @pl.when(pl.program_id(2) == pl.num_programs(2) - 1)
    def _store():
        o_ref[...] = acc_ref[...].astype(o_ref.dtype)


def pallas_matmul(x, w, *, transpose_rhs=False, tm=256, tn=256, tk=512):
    """x: (M, K); w: (K, N) or (N, K) if transpose_rhs. Pads only if unavoidable.
    For bf16 models, pass bf16 operands: the f32 VMEM accumulator keeps precision."""
    M, K = x.shape
    if transpose_rhs:
        N, K2 = w.shape
    else:
        K2, N = w.shape
    assert K == K2
    tm, Mp = _pick_tile(M, tm, 8)
    tk, Kp = _pick_tile(K, tk, 128)
    tn, Np = _pick_tile(N, tn, 128)

    xp = x if (Mp, Kp) == (M, K) else jnp.pad(x, ((0, Mp - M), (0, Kp - K)))
    if transpose_rhs:
        wp = w if (Np, Kp) == (N, K) else jnp.pad(w, ((0, Np - N), (0, Kp - K)))
        w_spec = pl.BlockSpec((tn, tk), lambda i, j, k: (j, k))
    else:
        wp = w if (Kp, Np) == (K, N) else jnp.pad(w, ((0, Kp - K), (0, Np - N)))
        w_spec = pl.BlockSpec((tk, tn), lambda i, j, k: (k, j))

    out = pl.pallas_call(
        functools.partial(_matmul_kernel, transpose_rhs=transpose_rhs),
        out_shape=jax.ShapeDtypeStruct((Mp, Np), x.dtype),
        grid=(Mp // tm, Np // tn, Kp // tk),
        in_specs=[pl.BlockSpec((tm, tk), lambda i, j, k: (i, k)), w_spec],
        out_specs=pl.BlockSpec((tm, tn), lambda i, j, k: (i, j)),
        scratch_shapes=[pltpu.VMEM((tm, tn), jnp.float32)],
        compiler_params=pltpu.CompilerParams(
            dimension_semantics=("parallel", "parallel", "arbitrary")),
    )(xp, wp)
    if (Mp, Np) != (M, N):
        out = out[:M, :N]
    return out


# ----------------------------------------------------------------------------
# Rotary embedding helpers.  The rotate_half sign is folded into a pre-signed
# sin, so the in-kernel rotation is a pure roll by head_dim/2.
# ----------------------------------------------------------------------------
def _rotate(x, half, use_roll):
    if use_roll:
        return pltpu.roll(x, shift=half, axis=-1)   # XLU slot; shift=D/2 is direction-agnostic
    return jnp.concatenate([x[..., half:], x[..., :half]], axis=-1)


def _rope_kernel(x_ref, cos_ref, sin_ref, o_ref, *, half, use_roll):
    x = x_ref[0]
    o_ref[0] = (x * cos_ref[...] + _rotate(x, half, use_roll) * sin_ref[...]
                ).astype(o_ref.dtype)


def pallas_rope(x, cos, sin_signed, *, block_s=512):
    """x: (B*H, S, D); cos / sin_signed: (S, D). Applies RoPE once, outside the
    attention hot loop."""
    BH, S, D = x.shape
    bs = _choose_block(S, block_s, 8)
    return pl.pallas_call(
        functools.partial(_rope_kernel, half=D // 2, use_roll=(D % 128 == 0)),
        out_shape=jax.ShapeDtypeStruct((BH, S, D), x.dtype),
        grid=(BH, S // bs),
        in_specs=[
            pl.BlockSpec((1, bs, D), lambda b, i: (b, i, 0)),
            pl.BlockSpec((bs, D), lambda b, i: (i, 0)),
            pl.BlockSpec((bs, D), lambda b, i: (i, 0)),
        ],
        out_specs=pl.BlockSpec((1, bs, D), lambda b, i: (b, i, 0)),
        compiler_params=pltpu.CompilerParams(
            dimension_semantics=("parallel", "parallel")),
    )(x, cos, sin_signed)


# ----------------------------------------------------------------------------
# Flash attention.  K/V arrive pre-rotated; Q is rotated + pre-scaled once per
# q tile (ki==0) into a VMEM scratch.  grid = (B*H, S//bq, S//bk), KV innermost.
# ----------------------------------------------------------------------------
def _flash_attn_kernel(q_ref, k_ref, v_ref, cos_ref, sin_ref, o_ref,
                       q_scr, m_ref, l_ref, acc_ref, *,
                       sm_scale, block_q, block_k, causal, half, use_roll):
    qi = pl.program_id(1)
    ki = pl.program_id(2)

    @pl.when(ki == 0)
    def _init():
        m_ref[...] = jnp.full_like(m_ref, NEG_INF)
        l_ref[...] = jnp.zeros_like(l_ref)
        acc_ref[...] = jnp.zeros_like(acc_ref)
        q = q_ref[0]
        q_rot = q * cos_ref[...] + _rotate(q, half, use_roll) * sin_ref[...]
        q_scr[...] = (q_rot * sm_scale).astype(q_scr.dtype)   # scale folded into q

    def _compute(apply_mask):
        q = q_scr[...]                                         # (bq, D) cached
        k = k_ref[0]                                           # (bk, D) pre-rotated
        v = v_ref[0]                                           # (bk, D)
        # Contract last dims of both operands: no k.T relayout on the XLU.
        s = lax.dot_general(q, k, (((1,), (1,)), ((), ())),
                            preferred_element_type=jnp.float32)  # (bq, bk)
        if apply_mask:
            row = qi * block_q + lax.broadcasted_iota(jnp.int32, (block_q, block_k), 0)
            col = ki * block_k + lax.broadcasted_iota(jnp.int32, (block_q, block_k), 1)
            s = jnp.where(col <= row, s, NEG_INF)

        m_prev = m_ref[...]
        m_new = jnp.maximum(m_prev, jnp.max(s, axis=-1, keepdims=True))
        alpha = jnp.exp(m_prev - m_new)
        p = jnp.exp(s - m_new)
        l_ref[...] = alpha * l_ref[...] + jnp.sum(p, axis=-1, keepdims=True)
        acc_ref[...] = alpha * acc_ref[...] + jnp.dot(
            p.astype(v.dtype), v, preferred_element_type=jnp.float32)
        m_ref[...] = m_new

    if causal:
        needs = ki * block_k < (qi + 1) * block_q               # tile has unmasked entries
        full_tile = (ki + 1) * block_k - 1 <= qi * block_q      # fully below diagonal
        pl.when(jnp.logical_and(needs, full_tile))(lambda: _compute(False))
        pl.when(jnp.logical_and(needs, jnp.logical_not(full_tile)))(lambda: _compute(True))
    else:
        _compute(False)

    @pl.when(ki == pl.num_programs(2) - 1)
    def _finalize():
        # approx=False keeps the tight numeric check vs. the f32 reference;
        # flip approx=True in production to route the divide to the EUP slot.
        inv_l = pl.reciprocal(l_ref[...], approx=False)
        o_ref[0] = (acc_ref[...] * inv_l).astype(o_ref.dtype)


def pallas_flash_attention(q, k_rot, v, cos, sin_signed, *, causal=True,
                           block_q=256, block_k=512):
    """q (un-rotated), k_rot (pre-rotated), v: (B*H, S, D); cos/sin_signed: (S, D)."""
    BH, S, D = q.shape
    assert S % 8 == 0, "seqlen must be a multiple of 8"
    bq = _choose_block(S, block_q, 8)
    bk = _choose_block(S, block_k, 128)

    if causal:
        # Clamp the KV block index to the causal boundary so above-diagonal
        # iterations re-request the same block and issue no new DMA.
        def kv_map(b, i, j):
            return (b, jnp.minimum(j, ((i + 1) * bq - 1) // bk), 0)
    else:
        def kv_map(b, i, j):
            return (b, j, 0)

    kernel = functools.partial(
        _flash_attn_kernel,
        sm_scale=1.0 / math.sqrt(D),
        block_q=bq, block_k=bk, causal=causal,
        half=D // 2, use_roll=(D % 128 == 0))

    return pl.pallas_call(
        kernel,
        out_shape=jax.ShapeDtypeStruct((BH, S, D), q.dtype),
        grid=(BH, S // bq, S // bk),
        in_specs=[
            pl.BlockSpec((1, bq, D), lambda b, i, j: (b, i, 0)),   # q
            pl.BlockSpec((1, bk, D), kv_map),                      # k (pre-rotated)
            pl.BlockSpec((1, bk, D), kv_map),                      # v
            pl.BlockSpec((bq, D), lambda b, i, j: (i, 0)),         # cos for q rows
            pl.BlockSpec((bq, D), lambda b, i, j: (i, 0)),         # signed sin for q rows
        ],
        out_specs=pl.BlockSpec((1, bq, D), lambda b, i, j: (b, i, 0)),
        scratch_shapes=[
            pltpu.VMEM((bq, D), q.dtype),       # RoPE'd + pre-scaled q tile
            pltpu.VMEM((bq, 1), jnp.float32),   # running max
            pltpu.VMEM((bq, 1), jnp.float32),   # running sum
            pltpu.VMEM((bq, D), jnp.float32),   # output accumulator
        ],
        compiler_params=pltpu.CompilerParams(
            dimension_semantics=("parallel", "parallel", "arbitrary")),
    )(q, k_rot, v, cos, sin_signed)


# ----------------------------------------------------------------------------
# Full Attention.forward:  fused QKV -> RoPE(K) -> flash SDPA (RoPE(Q) fused) -> wo
# ----------------------------------------------------------------------------
def prepare_qkv_weight(wq, wk, wv):
    """One-time (load-time) fuse + transpose of nn.Linear (out,in) weights into
    a single (in, 3*out) matrix — no per-forward weight copies."""
    return jnp.concatenate([wq, wk, wv], axis=0).T


def attention_forward(x, cos, sin, w_qkv_t, wo, n_heads, *, causal=True):
    B, S, dim = x.shape
    head_dim = dim // n_heads
    x2d = x.reshape(B * S, dim)

    qkv = pallas_matmul(x2d, w_qkv_t)                            # (B*S, 3*dim), x read once

    def split_heads(y2d):
        return (y2d.reshape(B, S, n_heads, head_dim)
                   .transpose(0, 2, 1, 3)
                   .reshape(B * n_heads, S, head_dim))
    # TODO(synk): for head_dim >= 128, fold this head split/merge into the
    # attention BlockSpec index_maps (column offsets into qkv) to drop the
    # extra HBM round trips; sub-128 head_dim keeps it in XLA.
    xq = split_heads(qkv[:, 0:dim])
    xk = split_heads(qkv[:, dim:2 * dim])
    xv = split_heads(qkv[:, 2 * dim:3 * dim])

    half = head_dim // 2
    sign = jnp.concatenate([jnp.full((half,), -1.0, dtype=cos.dtype),
                            jnp.ones((half,), dtype=cos.dtype)])
    sin_signed = sin * sign          # rotate_half sign folded into sin -> pure roll

    xk = pallas_rope(xk, cos, sin_signed)                        # K RoPE once
    out = pallas_flash_attention(xq, xk, xv, cos, sin_signed, causal=causal)

    out2d = (out.reshape(B, n_heads, S, head_dim)
                .transpose(0, 2, 1, 3)
                .reshape(B * S, dim))
    # wo consumed in its native (out, in) layout — no .T copy.
    return pallas_matmul(out2d, wo, transpose_rhs=True).reshape(B, S, dim)
    # TODO(synk): arbitrary (non-causal) additive masks would need to be streamed
    # as an extra tiled kernel input; the causal case is computed in-kernel.


# ----------------------------------------------------------------------------
# Pure-JAX reference (mirrors the PyTorch forward exactly) for validation.
# ----------------------------------------------------------------------------
def rotate_half(x):
    half = x.shape[-1] // 2
    return jnp.concatenate([-x[..., half:], x[..., :half]], axis=-1)


def reference_forward(x, cos, sin, mask, wq, wk, wv, wo, n_heads):
    B, S, dim = x.shape
    head_dim = dim // n_heads
    xq = (x @ wq.T).reshape(B, S, n_heads, head_dim)
    xk = (x @ wk.T).reshape(B, S, n_heads, head_dim)
    xv = (x @ wv.T).reshape(B, S, n_heads, head_dim)
    c = cos[None, :, None, :]
    s = sin[None, :, None, :]
    xq = xq * c + rotate_half(xq) * s
    xk = xk * c + rotate_half(xk) * s
    xq = jnp.transpose(xq, (0, 2, 1, 3))
    xk = jnp.transpose(xk, (0, 2, 1, 3))
    xv = jnp.transpose(xv, (0, 2, 1, 3))
    scores = (xq @ jnp.swapaxes(xk, 2, 3)) / math.sqrt(head_dim)
    if mask is not None:
        scores = scores + mask
    scores = jax.nn.softmax(scores.astype(jnp.float32), axis=-1).astype(xq.dtype)
    out = scores @ xv
    out = jnp.transpose(out, (0, 2, 1, 3)).reshape(B, S, -1)
    return out @ wo.T


if __name__ == "__main__":
    # Small ModelArgs-consistent shapes: dim=32, n_heads=4 -> head_dim=8, B=2, S=8.
    B, S, dim, n_heads = 2, 8, 32, 4
    head_dim = dim // n_heads

    key = jax.random.PRNGKey(0)
    kx, kq, kk, kv, ko = jax.random.split(key, 5)
    x = jax.random.normal(kx, (B, S, dim), dtype=jnp.float32)
    wq = 0.05 * jax.random.normal(kq, (dim, dim), dtype=jnp.float32)  # (out, in)
    wk = 0.05 * jax.random.normal(kk, (dim, dim), dtype=jnp.float32)
    wv = 0.05 * jax.random.normal(kv, (dim, dim), dtype=jnp.float32)
    wo = 0.05 * jax.random.normal(ko, (dim, dim), dtype=jnp.float32)

    # Rotary cos/sin (NeoX style): freqs repeated to full head_dim.
    inv_freq = 1.0 / (10000.0 ** (np.arange(0, head_dim, 2, dtype=np.float32) / head_dim))
    t = np.arange(S, dtype=np.float32)
    freqs = np.outer(t, inv_freq)                       # (S, head_dim/2)
    emb = np.concatenate([freqs, freqs], axis=-1)       # (S, head_dim)
    cos = jnp.asarray(np.cos(emb), dtype=jnp.float32)
    sin = jnp.asarray(np.sin(emb), dtype=jnp.float32)

    # One-time weight preparation (load time, not per-forward).
    w_qkv_t = prepare_qkv_weight(wq, wk, wv)            # (dim, 3*dim)

    out = attention_forward(x, cos, sin, w_qkv_t, wo, n_heads, causal=True)
    out = jax.block_until_ready(out)

    # Reference gets the equivalent explicit causal mask (kernel builds it in-kernel).
    mask_np = np.triu(np.full((S, S), float("-inf"), dtype=np.float32), k=1)
    mask = jnp.asarray(mask_np)[None, None, :, :]
    ref = reference_forward(x, cos, sin, mask, wq, wk, wv, wo, n_heads)

    assert out.shape == (B, S, dim)
    np.testing.assert_allclose(np.asarray(out), np.asarray(ref), atol=2e-4, rtol=2e-4)

    print("KERNEL_OK")
</pallas_src>

<mosaic_0001>
module attributes {stable_mosaic.version = 11 : i64} {
  func.func @_matmul_kernel(%arg0: i32, %arg1: i32, %arg2: i32, %arg3: memref<16x32xf32, #tpu.memory_space<vmem>>, %arg4: memref<32x96xf32, #tpu.memory_space<vmem>>, %arg5: memref<16x96xf32, #tpu.memory_space<vmem>>, %arg6: memref<16x96xf32, #tpu.memory_space<vmem>>) attributes {dimension_semantics = [#tpu.dimension_semantics<parallel>, #tpu.dimension_semantics<parallel>, #tpu.dimension_semantics<arbitrary>], iteration_bounds = array<i64: 1, 1, 1>, scalar_prefetch = 0 : i64, scratch_operands = 1 : i64, tpu.core_type = #tpu.core_type<tc>, window_params = [{transform_indices = @transform_0, window_bounds = array<i64: 16, 32>}, {transform_indices = @transform_1, window_bounds = array<i64: 32, 96>}, {transform_indices = @transform_2, window_bounds = array<i64: 16, 96>}]} {
    %c0_i32 = arith.constant 0 : i32
    %0 = arith.cmpi eq, %arg2, %c0_i32 : i32
    %1 = arith.extui %0 : i1 to i32
    %c0_i32_0 = arith.constant 0 : i32
    %2 = arith.cmpi ne, %1, %c0_i32_0 : i32
    scf.if %2 {
      %cst_10 = arith.constant 0.000000e+00 : f32
      %12 = vector.broadcast %cst_10 : f32 to vector<16x96xf32>
      %c0_11 = arith.constant 0 : index
      %c0_12 = arith.constant 0 : index
      %13 = vector.load %arg6[%c0_11, %c0_12] : memref<16x96xf32, #tpu.memory_space<vmem>>, vector<16x96xf32>
      tpu.vector_store %arg6[%c0_11, %c0_12], %12 {strides = array<i32>} : memref<16x96xf32, #tpu.memory_space<vmem>>, vector<16x96xf32>,
    } else {
    }
    %c0 = arith.constant 0 : index
    %c0_1 = arith.constant 0 : index
    %3 = vector.load %arg6[%c0, %c0_1] : memref<16x96xf32, #tpu.memory_space<vmem>>, vector<16x96xf32>
    %c0_2 = arith.constant 0 : index
    %c0_3 = arith.constant 0 : index
    %4 = vector.load %arg3[%c0_2, %c0_3] : memref<16x32xf32, #tpu.memory_space<vmem>>, vector<16x32xf32>
    %c0_4 = arith.constant 0 : index
    %c0_5 = arith.constant 0 : index
    %5 = vector.load %arg4[%c0_4, %c0_5] : memref<32x96xf32, #tpu.memory_space<vmem>>, vector<32x96xf32>
    %cst = arith.constant dense<0.000000e+00> : vector<16x96xf32>
    %6 = tpu.matmul %4, %5, %cst {dimension_numbers = #tpu.dot_dimension_numbers<[1], [0], [0], [1], [0, 0, 1, 1], [], []>} : vector<16x32xf32>, vector<32x96xf32>, vector<16x96xf32> -> vector<16x96xf32>
    %7 = arith.addf %3, %6 : vector<16x96xf32>
    %c0_6 = arith.constant 0 : index
    %c0_7 = arith.constant 0 : index
    %8 = vector.load %arg6[%c0_6, %c0_7] : memref<16x96xf32, #tpu.memory_space<vmem>>, vector<16x96xf32>
    tpu.vector_store %arg6[%c0_6, %c0_7], %7 {strides = array<i32>} : memref<16x96xf32, #tpu.memory_space<vmem>>, vector<16x96xf32>,
    %c0_i32_8 = arith.constant 0 : i32
    %9 = arith.cmpi eq, %arg2, %c0_i32_8 : i32
    %10 = arith.extui %9 : i1 to i32
    %c0_i32_9 = arith.constant 0 : i32
    %11 = arith.cmpi ne, %10, %c0_i32_9 : i32
    scf.if %11 {
      %c0_10 = arith.constant 0 : index
      %c0_11 = arith.constant 0 : index
      %12 = vector.load %arg6[%c0_10, %c0_11] : memref<16x96xf32, #tpu.memory_space<vmem>>, vector<16x96xf32>
      %c0_12 = arith.constant 0 : index
      %c0_13 = arith.constant 0 : index
      %13 = vector.load %arg5[%c0_12, %c0_13] : memref<16x96xf32, #tpu.memory_space<vmem>>, vector<16x96xf32>
      tpu.vector_store %arg5[%c0_12, %c0_13], %12 {strides = array<i32>} : memref<16x96xf32, #tpu.memory_space<vmem>>, vector<16x96xf32>,
    } else {
    }
    return
  }
  func.func @transform_0(%arg0: i32, %arg1: i32, %arg2: i32) -> (i32, i32) {
    %c0_i32 = arith.constant 0 : i32
    return %arg0, %arg2 : i32, i32
  }
  func.func @transform_1(%arg0: i32, %arg1: i32, %arg2: i32) -> (i32, i32) {
    %c0_i32 = arith.constant 0 : i32
    return %arg2, %arg1 : i32, i32
  }
  func.func @transform_2(%arg0: i32, %arg1: i32, %arg2: i32) -> (i32, i32) {
    %c0_i32 = arith.constant 0 : i32
    return %arg0, %arg1 : i32, i32
  }
}

</mosaic_0001>

<llo_original>
// kernel: tpu_custom_call.1
$region0: #{tpu_custom_call.1}
  #allocation0 [shape = 'u32[]', space=smem, size = 0x4, offset = 0x4, fixed_abs, tag = 'smem constant byte address 0x4 - core index']
  #allocation1 [shape = 'u32[72,128]{1,0:T(1,128)}', space=vmem, size = 0x9000, scoped, tag = 'internal scratch']
  #allocation2 [shape = 'f32[16,96]{1,0:T(8,128)}', space=vmem, size = 0x2000, scoped, tag = 'scratch operand']
  %s0 = inlined_call_operand.hbm [shape: f32[16,32], index: 0, kind: input, shape index: {}]
  %s1 = inlined_call_operand.hbm [shape: f32[32,96], index: 1, kind: input, shape index: {}]
  %s2 = inlined_call_operand.hbm [shape: f32[16,96], index: 2, kind: output, shape index: {}]
  %s3 = sld [smem:[#allocation0]]
  $region34: #{tpu_custom_call.1} parent=0
    _
  %s5 = ssub.s32 1, %s3
  %s6 = scalar_select 0, %s5, %s3
  $region1: #{tpu_custom_call.1} parent=0
    #allocation3 [shape = 'u8[8192]{0}', space=vmem, size = 0x2000, scoped, tag = 'input window, operand 0, single buffered']
    #allocation4 [shape = 's32[1]{0}', space=sflag, size = 0x4, scoped, tag = 'scoped memory for tpu_custom_call.1']
    #allocation5 [shape = 's32[1]{0}', space=sflag, size = 0x4, scoped, tag = 'scoped memory for tpu_custom_call.1']
    #allocation6 [shape = 'u8[16384]{0}', space=vmem, size = 0x4000, scoped, tag = 'input window, operand 1, single buffered']
    #allocation7 [shape = 's32[1]{0}', space=sflag, size = 0x4, scoped, tag = 'scoped memory for tpu_custom_call.1']
    #allocation8 [shape = 'u8[8192]{0}', space=vmem, size = 0x2000, scoped, tag = 'output window, operand 0, single buffered']
    %7 = vsyncpa [#allocation4], 0
    %8 = vsyncpa [#allocation7], 0
    %9 = vsyncpa [#allocation5], 0
    // Predicated region
    $region2: #{tpu_custom_call.1} parent=1 // pred_check
      _
    $region3: #{tpu_custom_call.1} parent=1 // pred_check_branch
      %11 = sbr.rel (0) target = $region5
    $region4: #{tpu_custom_call.1} parent=1 // pred_region
      %13 = vsyncadd [#allocation4], 0
      %s14 = sshll.u32 %s0, 4
      %s15 = int_to_ptr.hbm [resolvable:$true] %s14
      %s16 = sshll.u32 [#allocation3], 4
      %s17 = int_to_ptr.vmem [resolvable:$true] %s16
      %22 = dma.hbm_to_vmem [thread:$0]  %s15, 256, %s17, [#allocation4], 128, 128, 8
    $region5: #{tpu_custom_call.1} parent=1 // pred_fallthru
      _
    // Predicated region
    $region6: #{tpu_custom_call.1} parent=1 // pred_check
      _
    $region7: #{tpu_custom_call.1} parent=1 // pred_check_branch
      %24 = sbr.rel (0) target = $region9
    $region8: #{tpu_custom_call.1} parent=1 // pred_region
      %26 = vsyncadd [#allocation7], 0
      %s27 = sshll.u32 %s1, 4
      %s28 = int_to_ptr.hbm [resolvable:$true] %s27
      %s29 = sshll.u32 [#allocation6], 4
      %s30 = int_to_ptr.vmem [resolvable:$true] %s29
      %35 = dma.hbm_to_vmem [thread:$0]  %s28, 512, %s30, [#allocation7], 128, 128, 8
    $region9: #{tpu_custom_call.1} parent=1 // pred_fallthru
      _
    // Predicated region
    $region10: #{tpu_custom_call.1} parent=1 // pred_check
      _
    $region11: #{tpu_custom_call.1} parent=1 // pred_check_branch
      %37 = sbr.rel (0) target = $region13
    $region12: #{tpu_custom_call.1} parent=1 // pred_region
      %39 = dma.done [#allocation4], 256
    $region13: #{tpu_custom_call.1} parent=1 // pred_fallthru
      _
    // Predicated region
    $region14: #{tpu_custom_call.1} parent=1 // pred_check
      _
    $region15: #{tpu_custom_call.1} parent=1 // pred_check_branch
      %41 = sbr.rel (0) target = $region17
    $region16: #{tpu_custom_call.1} parent=1 // pred_region
      %43 = dma.done [#allocation7], 512
    $region17: #{tpu_custom_call.1} parent=1 // pred_fallthru
      _
    %p44 = scmp.eq.s32.totalorder 0, 0
    // Predicated region
    $region18: #{tpu_custom_call.1} parent=1 // pred_check
      %p45 = pneg %p44
    $region19: #{tpu_custom_call.1} parent=1 // pred_check_branch
      %47 = sbr.rel (%p45) target = $region21
    $region20: #{tpu_custom_call.1} parent=1 // pred_region
      %vm48 = vcmask 785408
      %49 = vst.msk [vmem:[#allocation2] sm:$0xff] %vm48, 0.0
      %50 = vst.msk [vmem:[#allocation2 + $0x8] sm:$0xff] %vm48, 0.0
    $region21: #{tpu_custom_call.1} parent=1 // pred_fallthru
      _
    %v51 = vld [vmem:[#allocation2] sm:$0xff]
    %v52 = vld [vmem:[#allocation2 + $0x8] sm:$0xff]
    %v53 = vld [vmem:[#allocation3] sm:$0xff]
    %v54 = vld [vmem:[#allocation3 + $0x8] sm:$0xff]
    %v55 = vld [vmem:[#allocation6] sm:$0xff]
    %v56 = vld [vmem:[#allocation6 + $0x8] sm:$0xff]
    %v57 = vld [vmem:[#allocation6 + $0x10] sm:$0xff]
    %v58 = vld [vmem:[#allocation6 + $0x18] sm:$0xff]
    %vm59 = vcmask 261120
    %v61 = vsel %vm59, %v53, 0
    %v64 = vsel %vm59, %v54, 0
    %66 = vmatpush.msra.mxu0 0.0
    %67 = vmatpush.msra.mxu0 0.0
    %68 = vmatpush.msra.mxu0 0.0
    %69 = vmatpush.msra.mxu0 0.0
    %70 = vmatpush.msra.mxu0 0.0
    %71 = vmatpush.msra.mxu0 0.0
    %72 = vmatpush.msra.mxu0 0.0
    %73 = vmatpush.msra.mxu0 0.0
    %74 = vmatpush.msra.mxu0 0.0
    %75 = vmatpush.msra.mxu0 0.0
    %76 = vmatpush.msra.mxu0 0.0
    %77 = vmatpush.msra.mxu0 0.0
    %78 = vmatpush.msra.mxu0 %v58
    %79 = vmatpush.msra.mxu0 %v57
    %80 = vmatpush.msra.mxu0 %v56
    %81 = vmatpush.msra.mxu0 %v55
    %82 = vmatmul.f32.gmra.mxu0 %v61
    %v83 = vpop.f32.mrf.mxu0
    %v84 = vadd.f32 0.0, %v83
    %85 = vmatmul.f32.gmra.mxu0 %v64
    %v86 = vpop.f32.mrf.mxu0
    %v87 = vadd.f32 0.0, %v86
    %88 = vdwg.mxu0
    %v89 = vadd.f32 %v51, %v84
    %v90 = vadd.f32 %v52, %v87
    %vm91 = vcmask 785408
    %92 = vst.msk [vmem:[#allocation2] sm:$0xff] %vm91, %v89
    %93 = vst.msk [vmem:[#allocation2 + $0x8] sm:$0xff] %vm91, %v90
    // Predicated region
    $region22: #{tpu_custom_call.1} parent=1 // pred_check
      %p94 = pneg %p44
    $region23: #{tpu_custom_call.1} parent=1 // pred_check_branch
      %96 = sbr.rel (%p94) target = $region25
    $region24: #{tpu_custom_call.1} parent=1 // pred_region
      %v97 = vld [vmem:[#allocation2] sm:$0xff]
      %v98 = vld [vmem:[#allocation2 + $0x8] sm:$0xff]
      %99 = vst.msk [vmem:[#allocation8] sm:$0xff] %vm91, %v97
      %100 = vst.msk [vmem:[#allocation8 + $0x8] sm:$0xff] %vm91, %v98
    $region25: #{tpu_custom_call.1} parent=1 // pred_fallthru
      _
    // Predicated region
    $region26: #{tpu_custom_call.1} parent=1 // pred_check
      _
    $region27: #{tpu_custom_call.1} parent=1 // pred_check_branch
      %102 = sbr.rel (0) target = $region29
    $region28: #{tpu_custom_call.1} parent=1 // pred_region
      %104 = vsyncadd [#allocation5], 0
      %s105 = sshll.u32 [#allocation8], 4
      %s106 = int_to_ptr.vmem [resolvable:$true] %s105
      %s107 = sshll.u32 %s2, 4
      %s108 = int_to_ptr.hbm [resolvable:$true] %s107
      %113 = dma.vmem_to_hbm [thread:$0]  %s106, 256, %s108, [#allocation5], 128, 128, 8
    $region29: #{tpu_custom_call.1} parent=1 // pred_fallthru
      _
    // Predicated region
    $region30: #{tpu_custom_call.1} parent=1 // pred_check
      _
    $region31: #{tpu_custom_call.1} parent=1 // pred_check_branch
      %115 = sbr.rel (0) target = $region33
    $region32: #{tpu_custom_call.1} parent=1 // pred_region
      %117 = dma.done [#allocation5], 256
    $region33: #{tpu_custom_call.1} parent=1 // pred_fallthru
      _
    %118 = vsyncpa [#allocation4], 1
    %119 = vsyncpa [#allocation7], 1
    %120 = vsyncpa [#allocation5], 1

</llo_original>
